<compile_context>
chip_gen: v5e
topology: v5e:2x2
jax: 0.10.0
libtpu: 0.0.40
codegen_flags: <defaults>
</compile_context>

<pallas_src>
import functools

import jax
import jax.numpy as jnp
from jax.experimental import pallas as pl
from jax.experimental.pallas import tpu as pltpu


def _round_up(x, m):
    return (x + m - 1) // m * m


def _vmem_budget_bytes():
    try:
        return pltpu.get_tpu_info().vmem_capacity_bytes
    except Exception:
        return 64 * 1024 * 1024  # conservative (v7x per-TC physical VMEM)


def _pick_tm(n_tokens):
    # f32 sublane granule is 8; cap at 128 (MXU row width on v5e; good default elsewhere).
    return min(128, _round_up(max(n_tokens, 1), 8))


def _embedding_kernel(ids_ref, table_ref, out_ref):
    # ids_ref:   (TM, 1)   int32   token ids for this row tile
    # table_ref: (Vp, Dp)  float32 zero-padded table, whole-array VMEM resident (1 buffer)
    # out_ref:   (TM, Dp)  float32 output tile (lane-dense: Dp % 128 == 0)
    ids = ids_ref[...]                                       # (TM, 1)
    tm = ids.shape[0]
    vp = table_ref.shape[0]
    col = jax.lax.broadcasted_iota(jnp.int32, (tm, vp), 1)   # (TM, Vp)
    onehot = (col == ids).astype(jnp.float32)                # (TM, Vp) exact 0/1 rows
    out_ref[...] = jnp.dot(
        onehot,
        table_ref[...],
        preferred_element_type=jnp.float32,
        precision=jax.lax.Precision.HIGHEST,   # keep the gather bit-exact vs jnp.take
    ).astype(out_ref.dtype)


def prepare_embedding_table(table):
    """Zero-pad the (V+1, D) table to (Vp, Dp) with 128-aligned dims.

    Call ONCE at parameter creation (or whenever the weights change), not per forward.
    """
    v_plus_1, d = table.shape
    vp = _round_up(v_plus_1, 128)
    dp = _round_up(d, 128)
    if (vp, dp) == (v_plus_1, d):
        return table
    return jnp.pad(table, ((0, vp - v_plus_1), (0, dp - d)))


def word_embedding2_forward(ids_bs, table_padded, *, logical_shape, tm=None):
    """WordEmbedding2.forward.

    ids_bs:        (B, S) int32 token ids in [0, vocab] (vocab == padding_idx).
    table_padded:  (Vp, Dp) float32, from prepare_embedding_table.
    logical_shape: (V+1, D) un-padded table shape.
    """
    v_plus_1, d = logical_shape
    vp, dp = table_padded.shape
    pad_row = v_plus_1 - 1  # padding_idx row (all zeros)

    b, s = ids_bs.shape
    n = b * s
    if tm is None:
        tm = _pick_tm(n)
    np_ = _round_up(n, tm)

    ids_flat = ids_bs.reshape(n).astype(jnp.int32)
    if np_ != n:
        ids_flat = jnp.pad(ids_flat, (0, np_ - n), constant_values=pad_row)
    ids_2d = ids_flat.reshape(np_, 1)

    # VMEM budget: 1x table + 2x (out tile) + 2x (ids tile) + one-hot temp.
    table_bytes = vp * dp * 4
    tile_bytes = 2 * (tm * dp * 4) + 2 * (tm * 4) + tm * vp * 4
    vmem_needed = table_bytes + tile_bytes
    budget = _vmem_budget_bytes()
    # TODO(synk): fall back to a DMA row-gather kernel instead of asserting here.
    assert vmem_needed < (budget * 3) // 4, (
        "padded table too large for the VMEM-resident one-hot gather path")

    out = pl.pallas_call(
        _embedding_kernel,
        out_shape=jax.ShapeDtypeStruct((np_, dp), table_padded.dtype),
        grid=(np_ // tm,),
        in_specs=[
            pl.BlockSpec((tm, 1), lambda i: (i, 0)),                 # token-id row tile
            pl.BlockSpec(memory_space=pltpu.MemorySpace.VMEM),       # whole table, 1 buffer
        ],
        out_specs=pl.BlockSpec((tm, dp), lambda i: (i, 0)),
        compiler_params=pltpu.CompilerParams(
            # Row tiles are independent -> megacore / 2-TC sharding on v7x.
            dimension_semantics=("parallel",),
            vmem_limit_bytes=max(vmem_needed + (4 << 20), 32 * 1024 * 1024),
        ),
    )(ids_2d, table_padded)

    # Strip token/D padding in a single slice (tm-adaptive => usually only the D pad).
    # TODO(synk): let the consumer accept the (np_, dp) padded slab to skip this copy.
    if np_ != n or dp != d:
        out = out[:n, :d]
    # Dropout with p=0.0 is the identity.
    return out.reshape(b, s, d)


def make_embedding_table(key, vocabulary_size, embedding_dimension):
    # nn.Embedding init: N(0, 1); padding_idx row zeroed.
    w = jax.random.normal(
        key, (vocabulary_size + 1, embedding_dimension), dtype=jnp.float32
    )
    w = w.at[vocabulary_size].set(0.0)
    return w


if __name__ == "__main__":
    key = jax.random.PRNGKey(0)
    k_tab, k_ids = jax.random.split(key)

    vocabulary_size = 50
    embedding_dimension = 300
    B, S = 2, 8

    table = make_embedding_table(k_tab, vocabulary_size, embedding_dimension)
    table_padded = prepare_embedding_table(table)  # hoisted out of the forward path

    # Token ids in [0, vocab]; include the padding index explicitly.
    ids = jax.random.randint(k_ids, (B, S), 0, vocabulary_size + 1, dtype=jnp.int32)
    ids = ids.at[0, -1].set(vocabulary_size)  # exercise padding_idx

    fwd = jax.jit(functools.partial(
        word_embedding2_forward,
        logical_shape=(vocabulary_size + 1, embedding_dimension)))
    out = fwd(ids, table_padded)
    out = jax.block_until_ready(out)

    # Reference (pure JAX) check of the lookup semantics.
    ref = jnp.take(table, ids, axis=0)
    assert out.shape == (B, S, embedding_dimension)
    assert jnp.allclose(out, ref, atol=1e-6, rtol=1e-6)
    assert jnp.allclose(out[0, -1], 0.0)  # padding row is zeros

    print("KERNEL_OK")
</pallas_src>

<mosaic_0001>
module attributes {stable_mosaic.version = 11 : i64} {
  func.func @_embedding_kernel(%arg0: i32, %arg1: memref<16x1xi32, #tpu.memory_space<vmem>>, %arg2: memref<128x384xf32, #tpu.memory_space<vmem>>, %arg3: memref<16x384xf32, #tpu.memory_space<vmem>>) attributes {dimension_semantics = [#tpu.dimension_semantics<parallel>], iteration_bounds = array<i64: 1>, scalar_prefetch = 0 : i64, scratch_operands = 0 : i64, tpu.core_type = #tpu.core_type<tc>, window_params = [{transform_indices = @transform_0, window_bounds = array<i64: 16, 1>}, {pipeline_mode = #tpu.pipeline_mode<synchronous>, transform_indices = @transform_1, window_bounds = array<i64: 128, 384>}, {transform_indices = @transform_2, window_bounds = array<i64: 16, 384>}]} {
    %c0 = arith.constant 0 : index
    %c0_0 = arith.constant 0 : index
    %0 = vector.load %arg1[%c0, %c0_0] : memref<16x1xi32, #tpu.memory_space<vmem>>, vector<16x1xi32>
    %1 = tpu.iota {dimensions = array<i32: 1>} : vector<16x128xi32>
    %2 = vector.broadcast %0 : vector<16x1xi32> to vector<16x128xi32>
    %3 = arith.cmpi eq, %1, %2 : vector<16x128xi32>
    %4 = arith.extui %3 : vector<16x128xi1> to vector<16x128xi32>
    %5 = arith.sitofp %4 : vector<16x128xi32> to vector<16x128xf32>
    %c0_1 = arith.constant 0 : index
    %c0_2 = arith.constant 0 : index
    %6 = vector.load %arg2[%c0_1, %c0_2] : memref<128x384xf32, #tpu.memory_space<vmem>>, vector<128x384xf32>
    %cst = arith.constant dense<0.000000e+00> : vector<16x384xf32>
    %7 = tpu.matmul %5, %6, %cst {dimension_numbers = #tpu.dot_dimension_numbers<[1], [0], [0], [1], [0, 0, 1, 1], [], []>, precision = #tpu.contract_precision<fp32>} : vector<16x128xf32>, vector<128x384xf32>, vector<16x384xf32> -> vector<16x384xf32>
    %c0_3 = arith.constant 0 : index
    %c0_4 = arith.constant 0 : index
    %8 = vector.load %arg3[%c0_3, %c0_4] : memref<16x384xf32, #tpu.memory_space<vmem>>, vector<16x384xf32>
    tpu.vector_store %arg3[%c0_3, %c0_4], %7 {strides = array<i32>} : memref<16x384xf32, #tpu.memory_space<vmem>>, vector<16x384xf32>,
    return
  }
  func.func @transform_0(%arg0: i32) -> (i32, i32) {
    %c0_i32 = arith.constant 0 : i32
    %c0_i32_0 = arith.constant 0 : i32
    return %arg0, %c0_i32 : i32, i32
  }
  func.func @transform_1(%arg0: i32) -> (i32, i32) {
    %c0_i32 = arith.constant 0 : i32
    %c0_i32_0 = arith.constant 0 : i32
    %c0_i32_1 = arith.constant 0 : i32
    return %c0_i32, %c0_i32_0 : i32, i32
  }
  func.func @transform_2(%arg0: i32) -> (i32, i32) {
    %c0_i32 = arith.constant 0 : i32
    %c0_i32_0 = arith.constant 0 : i32
    return %arg0, %c0_i32 : i32, i32
  }
}

</mosaic_0001>

<llo_original>
// kernel: word_embedding2_forward.1
$region0: #{word_embedding2_forward.1}
  #allocation0 [shape = 'u32[]', space=smem, size = 0x4, offset = 0x4, fixed_abs, tag = 'smem constant byte address 0x4 - core index']
  #allocation1 [shape = 'u32[72,128]{1,0:T(1,128)}', space=vmem, size = 0x9000, scoped, tag = 'internal scratch']
  %s0 = inlined_call_operand.vmem [shape: s32[16,1], index: 0, kind: input, shape index: {}]
  %s1 = inlined_call_operand.hbm [shape: f32[128,384], index: 1, kind: input, shape index: {}]
  %s2 = inlined_call_operand.vmem [shape: f32[16,384], index: 2, kind: output, shape index: {}]
  %s3 = sld [smem:[#allocation0]]
  $region22: #{word_embedding2_forward.1} parent=0
    _
  %s5 = ssub.s32 1, %s3
  %s6 = scalar_select 0, %s5, %s3
  $region1: #{word_embedding2_forward.1} parent=0
    #allocation2 [shape = 'u8[196608]{0}', space=vmem, size = 0x30000, scoped, tag = 'input window, operand 1, single buffered']
    #allocation3 [shape = 's32[1]{0}', space=sflag, size = 0x4, scoped, tag = 'scoped memory for word_embedding2_forward.1']
    %7 = vsyncpa [#allocation3], 0
    // Predicated region
    $region2: #{word_embedding2_forward.1} parent=1 // pred_check
      _
    $region3: #{word_embedding2_forward.1} parent=1 // pred_check_branch
      %9 = sbr.rel (0) target = $region5
    $region4: #{word_embedding2_forward.1} parent=1 // pred_region
      _
    $region5: #{word_embedding2_forward.1} parent=1 // pred_fallthru
      _
    // Predicated region
    $region6: #{word_embedding2_forward.1} parent=1 // pred_check
      _
    $region7: #{word_embedding2_forward.1} parent=1 // pred_check_branch
      %11 = sbr.rel (0) target = $region9
    $region8: #{word_embedding2_forward.1} parent=1 // pred_region
      %13 = vsyncadd [#allocation3], 0
      %s14 = sshll.u32 %s1, 4
      %s15 = int_to_ptr.hbm [resolvable:$true] %s14
      %s16 = sshll.u32 [#allocation2], 4
      %s17 = int_to_ptr.vmem [resolvable:$true] %s16
      %22 = dma.hbm_to_vmem [thread:$0]  %s15, 6144, %s17, [#allocation3], 384, 384, 24
    $region9: #{word_embedding2_forward.1} parent=1 // pred_fallthru
      _
    // Predicated region
    $region10: #{word_embedding2_forward.1} parent=1 // pred_check
      _
    $region11: #{word_embedding2_forward.1} parent=1 // pred_check_branch
      %24 = sbr.rel (0) target = $region13
    $region12: #{word_embedding2_forward.1} parent=1 // pred_region
      %26 = dma.done [#allocation3], 6144
    $region13: #{word_embedding2_forward.1} parent=1 // pred_fallthru
      _
    %v27 = vld [vmem:[%s0] sm:$0xff]
    %v28 = vld [vmem:[%s0 + $0x8] sm:$0xff]
    %v29 = vlaneseq
    %v30 = vand.u32 %v29, 127
    %31 = vset.pattern.permute.xlu0 0
    %32 = vperm.xlu0 %31, %v27
    %v33 = vpop.permute.xlu0 %32
    %34 = vset.pattern.permute.xlu0 0
    %35 = vperm.xlu0 %34, %v28
    %v36 = vpop.permute.xlu0 %35
    %vm37 = vcmp.eq.s32.totalorder %v30, %v33
    %vm38 = vcmp.eq.s32.totalorder %v30, %v36
    %v39 = vsel %vm37, 1, 0
    %v40 = vsel %vm38, 1, 0
    %v41 = vcvt.s32.f32 %v39
    %v42 = vcvt.s32.f32 %v40
    %v43 = vld [vmem:[#allocation2] sm:$0xff]
    %v44 = vld [vmem:[#allocation2 + $0x8] sm:$0xff]
    %v45 = vld [vmem:[#allocation2 + $0x10] sm:$0xff]
    %v46 = vld [vmem:[#allocation2 + $0x18] sm:$0xff]
    %v47 = vld [vmem:[#allocation2 + $0x20] sm:$0xff]
    %v48 = vld [vmem:[#allocation2 + $0x28] sm:$0xff]
    %v49 = vld [vmem:[#allocation2 + $0x30] sm:$0xff]
    %v50 = vld [vmem:[#allocation2 + $0x38] sm:$0xff]
    %v51 = vld [vmem:[#allocation2 + $0x40] sm:$0xff]
    %v52 = vld [vmem:[#allocation2 + $0x48] sm:$0xff]
    %v53 = vld [vmem:[#allocation2 + $0x50] sm:$0xff]
    %v54 = vld [vmem:[#allocation2 + $0x58] sm:$0xff]
    %v55 = vld [vmem:[#allocation2 + $0x60] sm:$0xff]
    %v56 = vld [vmem:[#allocation2 + $0x68] sm:$0xff]
    %v57 = vld [vmem:[#allocation2 + $0x70] sm:$0xff]
    %v58 = vld [vmem:[#allocation2 + $0x78] sm:$0xff]
    %v59 = vld [vmem:[#allocation2 + $0x80] sm:$0xff]
    %v60 = vld [vmem:[#allocation2 + $0x88] sm:$0xff]
    %v61 = vld [vmem:[#allocation2 + $0x90] sm:$0xff]
    %v62 = vld [vmem:[#allocation2 + $0x98] sm:$0xff]
    %v63 = vld [vmem:[#allocation2 + $0xa0] sm:$0xff]
    %v64 = vld [vmem:[#allocation2 + $0xa8] sm:$0xff]
    %v65 = vld [vmem:[#allocation2 + $0xb0] sm:$0xff]
    %v66 = vld [vmem:[#allocation2 + $0xb8] sm:$0xff]
    %v67 = vld [vmem:[#allocation2 + $0xc0] sm:$0xff]
    %v68 = vld [vmem:[#allocation2 + $0xc8] sm:$0xff]
    %v69 = vld [vmem:[#allocation2 + $0xd0] sm:$0xff]
    %v70 = vld [vmem:[#allocation2 + $0xd8] sm:$0xff]
    %v71 = vld [vmem:[#allocation2 + $0xe0] sm:$0xff]
    %v72 = vld [vmem:[#allocation2 + $0xe8] sm:$0xff]
    %v73 = vld [vmem:[#allocation2 + $0xf0] sm:$0xff]
    %v74 = vld [vmem:[#allocation2 + $0xf8] sm:$0xff]
    %v75 = vld [vmem:[#allocation2 + $0x100] sm:$0xff]
    %v76 = vld [vmem:[#allocation2 + $0x108] sm:$0xff]
    %v77 = vld [vmem:[#allocation2 + $0x110] sm:$0xff]
    %v78 = vld [vmem:[#allocation2 + $0x118] sm:$0xff]
    %v79 = vld [vmem:[#allocation2 + $0x120] sm:$0xff]
    %v80 = vld [vmem:[#allocation2 + $0x128] sm:$0xff]
    %v81 = vld [vmem:[#allocation2 + $0x130] sm:$0xff]
    %v82 = vld [vmem:[#allocation2 + $0x138] sm:$0xff]
    %v83 = vld [vmem:[#allocation2 + $0x140] sm:$0xff]
    %v84 = vld [vmem:[#allocation2 + $0x148] sm:$0xff]
    %v85 = vld [vmem:[#allocation2 + $0x150] sm:$0xff]
    %v86 = vld [vmem:[#allocation2 + $0x158] sm:$0xff]
    %v87 = vld [vmem:[#allocation2 + $0x160] sm:$0xff]
    %v88 = vld [vmem:[#allocation2 + $0x168] sm:$0xff]
    %v89 = vld [vmem:[#allocation2 + $0x170] sm:$0xff]
    %v90 = vld [vmem:[#allocation2 + $0x178] sm:$0xff]
    %v91 = vand.u32 %v88, 4294901760
    %92 = vmatpush.msra.mxu0 %v91
    %v93 = vand.u32 %v85, 4294901760
    %94 = vmatpush.msra.mxu0 %v93
    %v95 = vand.u32 %v82, 4294901760
    %96 = vmatpush.msra.mxu0 %v95
    %v97 = vand.u32 %v79, 4294901760
    %98 = vmatpush.msra.mxu0 %v97
    %v99 = vand.u32 %v76, 4294901760
    %100 = vmatpush.msra.mxu0 %v99
    %v101 = vand.u32 %v73, 4294901760
    %102 = vmatpush.msra.mxu0 %v101
    %v103 = vand.u32 %v70, 4294901760
    %104 = vmatpush.msra.mxu0 %v103
    %v105 = vand.u32 %v67, 4294901760
    %106 = vmatpush.msra.mxu0 %v105
    %v107 = vand.u32 %v64, 4294901760
    %108 = vmatpush.msra.mxu0 %v107
    %v109 = vand.u32 %v61, 4294901760
    %110 = vmatpush.msra.mxu0 %v109
    %v111 = vand.u32 %v58, 4294901760
    %112 = vmatpush.msra.mxu0 %v111
    %v113 = vand.u32 %v55, 4294901760
    %114 = vmatpush.msra.mxu0 %v113
    %v115 = vand.u32 %v52, 4294901760
    %116 = vmatpush.msra.mxu0 %v115
    %v117 = vand.u32 %v49, 4294901760
    %118 = vmatpush.msra.mxu0 %v117
    %v119 = vand.u32 %v46, 4294901760
    %120 = vmatpush.msra.mxu0 %v119
    %v121 = vand.u32 %v43, 4294901760
    %122 = vmatpush.msra.mxu0 %v121
    %v123 = vand.u32 %v41, 4294901760
    %v124 = vsub.f32 %v41, %v123
    %v125 = vand.u32 %v124, 4294901760
    %v126 = vsub.f32 %v124, %v125
    %v127 = vand.u32 %v126, 4294901760
    %128 = vmatmul.f32.gmra.mxu0 %v127
    %v129 = vpop.f32.mrf.mxu0
    %v130 = vadd.f32 0.0, %v129
    %v131 = vand.u32 %v42, 4294901760
    %v132 = vsub.f32 %v42, %v131
    %v133 = vand.u32 %v132, 4294901760
    %v134 = vsub.f32 %v132, %v133
    %v135 = vand.u32 %v134, 4294901760
    %136 = vmatmul.f32.gmra.mxu0 %v135
    %v137 = vpop.f32.mrf.mxu0
    %v138 = vadd.f32 0.0, %v137
    %139 = vdwg.mxu0
    %v140 = vand.u32 %v88, 4294901760
    %v141 = vsub.f32 %v88, %v140
    %v142 = vand.u32 %v141, 4294901760
    %v143 = vsub.f32 %v141, %v142
    %v144 = vand.u32 %v143, 4294901760
    %145 = vmatpush.msra.mxu0 %v144
    %v146 = vand.u32 %v85, 4294901760
    %v147 = vsub.f32 %v85, %v146
    %v148 = vand.u32 %v147, 4294901760
    %v149 = vsub.f32 %v147, %v148
    %v150 = vand.u32 %v149, 4294901760
    %151 = vmatpush.msra.mxu0 %v150
    %v152 = vand.u32 %v82, 4294901760
    %v153 = vsub.f32 %v82, %v152
    %v154 = vand.u32 %v153, 4294901760
    %v155 = vsub.f32 %v153, %v154
    %v156 = vand.u32 %v155, 4294901760
    %157 = vmatpush.msra.mxu0 %v156
    %v158 = vand.u32 %v79, 4294901760
    %v159 = vsub.f32 %v79, %v158
    %v160 = vand.u32 %v159, 4294901760
    %v161 = vsub.f32 %v159, %v160
    %v162 = vand.u32 %v161, 4294901760
    %163 = vmatpush.msra.mxu0 %v162
    %v164 = vand.u32 %v76, 4294901760
    %v165 = vsub.f32 %v76, %v164
    %v166 = vand.u32 %v165, 4294901760
    %v167 = vsub.f32 %v165, %v166
    %v168 = vand.u32 %v167, 4294901760
    %169 = vmatpush.msra.mxu0 %v168
    %v170 = vand.u32 %v73, 4294901760
    %v171 = vsub.f32 %v73, %v170
    %v172 = vand.u32 %v171, 4294901760
    %v173 = vsub.f32 %v171, %v172
    %v174 = vand.u32 %v173, 4294901760
    %175 = vmatpush.msra.mxu0 %v174
    %v176 = vand.u32 %v70, 4294901760
    %v177 = vsub.f32 %v70, %v176
    %v178 = vand.u32 %v177, 4294901760
    %v179 = vsub.f32 %v177, %v178
    %v180 = vand.u32 %v179, 4294901760
    %181 = vmatpush.msra.mxu0 %v180
    %v182 = vand.u32 %v67, 4294901760
    %v183 = vsub.f32 %v67, %v182
    %v184 = vand.u32 %v183, 4294901760
    %v185 = vsub.f32 %v183, %v184
    %v186 = vand.u32 %v185, 4294901760
    %187 = vmatpush.msra.mxu0 %v186
    %v188 = vand.u32 %v64, 4294901760
    %v189 = vsub.f32 %v64, %v188
    %v190 = vand.u32 %v189, 4294901760
    %v191 = vsub.f32 %v189, %v190
    %v192 = vand.u32 %v191, 4294901760
    %193 = vmatpush.msra.mxu0 %v192
    %v194 = vand.u32 %v61, 4294901760
    %v195 = vsub.f32 %v61, %v194
    %v196 = vand.u32 %v195, 4294901760
    %v197 = vsub.f32 %v195, %v196
    %v198 = vand.u32 %v197, 4294901760
    %199 = vmatpush.msra.mxu0 %v198
    %v200 = vand.u32 %v58, 4294901760
    %v201 = vsub.f32 %v58, %v200
    %v202 = vand.u32 %v201, 4294901760
    %v203 = vsub.f32 %v201, %v202
    %v204 = vand.u32 %v203, 4294901760
    %205 = vmatpush.msra.mxu0 %v204
    %v206 = vand.u32 %v55, 4294901760
    %v207 = vsub.f32 %v55, %v206
    %v208 = vand.u32 %v207, 4294901760
    %v209 = vsub.f32 %v207, %v208
    %v210 = vand.u32 %v209, 4294901760
    %211 = vmatpush.msra.mxu0 %v210
    %v212 = vand.u32 %v52, 4294901760
    %v213 = vsub.f32 %v52, %v212
    %v214 = vand.u32 %v213, 4294901760
    %v215 = vsub.f32 %v213, %v214
    %v216 = vand.u32 %v215, 4294901760
    %217 = vmatpush.msra.mxu0 %v216
    %v218 = vand.u32 %v49, 4294901760
    %v219 = vsub.f32 %v49, %v218
    %v220 = vand.u32 %v219, 4294901760
    %v221 = vsub.f32 %v219, %v220
    %v222 = vand.u32 %v221, 4294901760
    %223 = vmatpush.msra.mxu0 %v222
    %v224 = vand.u32 %v46, 4294901760
    %v225 = vsub.f32 %v46, %v224
    %v226 = vand.u32 %v225, 4294901760
    %v227 = vsub.f32 %v225, %v226
    %v228 = vand.u32 %v227, 4294901760
    %229 = vmatpush.msra.mxu0 %v228
    %v230 = vand.u32 %v43, 4294901760
    %v231 = vsub.f32 %v43, %v230
    %v232 = vand.u32 %v231, 4294901760
    %v233 = vsub.f32 %v231, %v232
    %v234 = vand.u32 %v233, 4294901760
    %235 = vmatpush.msra.mxu0 %v234
    %v236 = vand.u32 %v41, 4294901760
    %237 = vmatmul.f32.gmra.mxu0 %v236
    %v238 = vpop.f32.mrf.mxu0
    %v239 = vadd.f32 %v130, %v238
    %v240 = vand.u32 %v42, 4294901760
    %241 = vmatmul.f32.gmra.mxu0 %v240
    %v242 = vpop.f32.mrf.mxu0
    %v243 = vadd.f32 %v138, %v242
    %244 = vdwg.mxu0
    %v245 = vand.u32 %v88, 4294901760
    %v246 = vsub.f32 %v88, %v245
    %247 = vmatpush.msra.mxu0 %v246
    %v248 = vand.u32 %v85, 4294901760
    %v249 = vsub.f32 %v85, %v248
    %250 = vmatpush.msra.mxu0 %v249
    %v251 = vand.u32 %v82, 4294901760
    %v252 = vsub.f32 %v82, %v251
    %253 = vmatpush.msra.mxu0 %v252
    %v254 = vand.u32 %v79, 4294901760
    %v255 = vsub.f32 %v79, %v254
    %256 = vmatpush.msra.mxu0 %v255
    %v257 = vand.u32 %v76, 4294901760
    %v258 = vsub.f32 %v76, %v257
    %259 = vmatpush.msra.mxu0 %v258
    %v260 = vand.u32 %v73, 4294901760
    %v261 = vsub.f32 %v73, %v260
    %262 = vmatpush.msra.mxu0 %v261
    %v263 = vand.u32 %v70, 4294901760
    %v264 = vsub.f32 %v70, %v263
    %265 = vmatpush.msra.mxu0 %v264
    %v266 = vand.u32 %v67, 4294901760
    %v267 = vsub.f32 %v67, %v266
    %268 = vmatpush.msra.mxu0 %v267
    %v269 = vand.u32 %v64, 4294901760
    %v270 = vsub.f32 %v64, %v269
    %271 = vmatpush.msra.mxu0 %v270
    %v272 = vand.u32 %v61, 4294901760
    %v273 = vsub.f32 %v61, %v272
    %274 = vmatpush.msra.mxu0 %v273
    %v275 = vand.u32 %v58, 4294901760
    %v276 = vsub.f32 %v58, %v275
    %277 = vmatpush.msra.mxu0 %v276
    %v278 = vand.u32 %v55, 4294901760
    %v279 = vsub.f32 %v55, %v278
    %280 = vmatpush.msra.mxu0 %v279
    %v281 = vand.u32 %v52, 4294901760
    %v282 = vsub.f32 %v52, %v281
    %283 = vmatpush.msra.mxu0 %v282
    %v284 = vand.u32 %v49, 4294901760
    %v285 = vsub.f32 %v49, %v284
    %286 = vmatpush.msra.mxu0 %v285
    %v287 = vand.u32 %v46, 4294901760
    %v288 = vsub.f32 %v46, %v287
    %289 = vmatpush.msra.mxu0 %v288
    %v290 = vand.u32 %v43, 4294901760
    %v291 = vsub.f32 %v43, %v290
    %292 = vmatpush.msra.mxu0 %v291
    %v293 = vand.u32 %v41, 4294901760
    %v294 = vsub.f32 %v41, %v293
    %295 = vmatmul.f32.gmra.mxu0 %v294
    %v296 = vpop.f32.mrf.mxu0
    %v297 = vadd.f32 %v239, %v296
    %v298 = vand.u32 %v42, 4294901760
    %v299 = vsub.f32 %v42, %v298
    %300 = vmatmul.f32.gmra.mxu0 %v299
    %v301 = vpop.f32.mrf.mxu0
    %v302 = vadd.f32 %v243, %v301
    %303 = vdwg.mxu0
    %v304 = vand.u32 %v88, 4294901760
    %305 = vmatpush.msra.mxu0 %v304
    %v306 = vand.u32 %v85, 4294901760
    %307 = vmatpush.msra.mxu0 %v306
    %v308 = vand.u32 %v82, 4294901760
    %309 = vmatpush.msra.mxu0 %v308
    %v310 = vand.u32 %v79, 4294901760
    %311 = vmatpush.msra.mxu0 %v310
    %v312 = vand.u32 %v76, 4294901760
    %313 = vmatpush.msra.mxu0 %v312
    %v314 = vand.u32 %v73, 4294901760
    %315 = vmatpush.msra.mxu0 %v314
    %v316 = vand.u32 %v70, 4294901760
    %317 = vmatpush.msra.mxu0 %v316
    %v318 = vand.u32 %v67, 4294901760
    %319 = vmatpush.msra.mxu0 %v318
    %v320 = vand.u32 %v64, 4294901760
    %321 = vmatpush.msra.mxu0 %v320
    %v322 = vand.u32 %v61, 4294901760
    %323 = vmatpush.msra.mxu0 %v322
    %v324 = vand.u32 %v58, 4294901760
    %325 = vmatpush.msra.mxu0 %v324
    %v326 = vand.u32 %v55, 4294901760
    %327 = vmatpush.msra.mxu0 %v326
    %v328 = vand.u32 %v52, 4294901760
    %329 = vmatpush.msra.mxu0 %v328
    %v330 = vand.u32 %v49, 4294901760
    %331 = vmatpush.msra.mxu0 %v330
    %v332 = vand.u32 %v46, 4294901760
    %333 = vmatpush.msra.mxu0 %v332
    %v334 = vand.u32 %v43, 4294901760
    %335 = vmatpush.msra.mxu0 %v334
    %v336 = vand.u32 %v41, 4294901760
    %v337 = vsub.f32 %v41, %v336
    %v338 = vand.u32 %v337, 4294901760
    %339 = vmatmul.f32.gmra.mxu0 %v338
    %v340 = vpop.f32.mrf.mxu0
    %v341 = vadd.f32 %v297, %v340
    %v342 = vand.u32 %v42, 4294901760
    %v343 = vsub.f32 %v42, %v342
    %v344 = vand.u32 %v343, 4294901760
    %345 = vmatmul.f32.gmra.mxu0 %v344
    %v346 = vpop.f32.mrf.mxu0
    %v347 = vadd.f32 %v302, %v346
    %348 = vdwg.mxu0
    %v349 = vand.u32 %v88, 4294901760
    %v350 = vsub.f32 %v88, %v349
    %v351 = vand.u32 %v350, 4294901760
    %352 = vmatpush.msra.mxu0 %v351
    %v353 = vand.u32 %v85, 4294901760
    %v354 = vsub.f32 %v85, %v353
    %v355 = vand.u32 %v354, 4294901760
    %356 = vmatpush.msra.mxu0 %v355
    %v357 = vand.u32 %v82, 4294901760
    %v358 = vsub.f32 %v82, %v357
    %v359 = vand.u32 %v358, 4294901760
    %360 = vmatpush.msra.mxu0 %v359
    %v361 = vand.u32 %v79, 4294901760
    %v362 = vsub.f32 %v79, %v361
    %v363 = vand.u32 %v362, 4294901760
    %364 = vmatpush.msra.mxu0 %v363
    %v365 = vand.u32 %v76, 4294901760
    %v366 = vsub.f32 %v76, %v365
    %v367 = vand.u32 %v366, 4294901760
    %368 = vmatpush.msra.mxu0 %v367
    %v369 = vand.u32 %v73, 4294901760
    %v370 = vsub.f32 %v73, %v369
    %v371 = vand.u32 %v370, 4294901760
    %372 = vmatpush.msra.mxu0 %v371
    %v373 = vand.u32 %v70, 4294901760
    %v374 = vsub.f32 %v70, %v373
    %v375 = vand.u32 %v374, 4294901760
    %376 = vmatpush.msra.mxu0 %v375
    %v377 = vand.u32 %v67, 4294901760
    %v378 = vsub.f32 %v67, %v377
    %v379 = vand.u32 %v378, 4294901760
    %380 = vmatpush.msra.mxu0 %v379
    %v381 = vand.u32 %v64, 4294901760
    %v382 = vsub.f32 %v64, %v381
    %v383 = vand.u32 %v382, 4294901760
    %384 = vmatpush.msra.mxu0 %v383
    %v385 = vand.u32 %v61, 4294901760
    %v386 = vsub.f32 %v61, %v385
    %v387 = vand.u32 %v386, 4294901760
    %388 = vmatpush.msra.mxu0 %v387
    %v389 = vand.u32 %v58, 4294901760
    %v390 = vsub.f32 %v58, %v389
    %v391 = vand.u32 %v390, 4294901760
    %392 = vmatpush.msra.mxu0 %v391
    %v393 = vand.u32 %v55, 4294901760
    %v394 = vsub.f32 %v55, %v393
    %v395 = vand.u32 %v394, 4294901760
    %396 = vmatpush.msra.mxu0 %v395
    %v397 = vand.u32 %v52, 4294901760
    %v398 = vsub.f32 %v52, %v397
    %v399 = vand.u32 %v398, 4294901760
    %400 = vmatpush.msra.mxu0 %v399
    %v401 = vand.u32 %v49, 4294901760
    %v402 = vsub.f32 %v49, %v401
    %v403 = vand.u32 %v402, 4294901760
    %404 = vmatpush.msra.mxu0 %v403
    %v405 = vand.u32 %v46, 4294901760
    %v406 = vsub.f32 %v46, %v405
    %v407 = vand.u32 %v406, 4294901760
    %408 = vmatpush.msra.mxu0 %v407
    %v409 = vand.u32 %v43, 4294901760
    %v410 = vsub.f32 %v43, %v409
    %v411 = vand.u32 %v410, 4294901760
    %412 = vmatpush.msra.mxu0 %v411
    %v413 = vand.u32 %v41, 4294901760
    %414 = vmatmul.f32.gmra.mxu0 %v413
    %v415 = vpop.f32.mrf.mxu0
    %v416 = vadd.f32 %v341, %v415
    %v417 = vand.u32 %v42, 4294901760
    %418 = vmatmul.f32.gmra.mxu0 %v417
    %v419 = vpop.f32.mrf.mxu0
    %v420 = vadd.f32 %v347, %v419
    %421 = vdwg.mxu0
    %v422 = vand.u32 %v88, 4294901760
    %423 = vmatpush.msra.mxu0 %v422
    %v424 = vand.u32 %v85, 4294901760
    %425 = vmatpush.msra.mxu0 %v424
    %v426 = vand.u32 %v82, 4294901760
    %427 = vmatpush.msra.mxu0 %v426
    %v428 = vand.u32 %v79, 4294901760
    %429 = vmatpush.msra.mxu0 %v428
    %v430 = vand.u32 %v76, 4294901760
    %431 = vmatpush.msra.mxu0 %v430
    %v432 = vand.u32 %v73, 4294901760
    %433 = vmatpush.msra.mxu0 %v432
    %v434 = vand.u32 %v70, 4294901760
    %435 = vmatpush.msra.mxu0 %v434
    %v436 = vand.u32 %v67, 4294901760
    %437 = vmatpush.msra.mxu0 %v436
    %v438 = vand.u32 %v64, 4294901760
    %439 = vmatpush.msra.mxu0 %v438
    %v440 = vand.u32 %v61, 4294901760
    %441 = vmatpush.msra.mxu0 %v440
    %v442 = vand.u32 %v58, 4294901760
    %443 = vmatpush.msra.mxu0 %v442
    %v444 = vand.u32 %v55, 4294901760
    %445 = vmatpush.msra.mxu0 %v444
    %v446 = vand.u32 %v52, 4294901760
    %447 = vmatpush.msra.mxu0 %v446
    %v448 = vand.u32 %v49, 4294901760
    %449 = vmatpush.msra.mxu0 %v448
    %v450 = vand.u32 %v46, 4294901760
    %451 = vmatpush.msra.mxu0 %v450
    %v452 = vand.u32 %v43, 4294901760
    %453 = vmatpush.msra.mxu0 %v452
    %v454 = vand.u32 %v41, 4294901760
    %455 = vmatmul.f32.gmra.mxu0 %v454
    %v456 = vpop.f32.mrf.mxu0
    %v457 = vadd.f32 %v416, %v456
    %v458 = vand.u32 %v42, 4294901760
    %459 = vmatmul.f32.gmra.mxu0 %v458
    %v460 = vpop.f32.mrf.mxu0
    %v461 = vadd.f32 %v420, %v460
    %462 = vdwg.mxu0
    %v463 = vand.u32 %v89, 4294901760
    %464 = vmatpush.msra.mxu0 %v463
    %v465 = vand.u32 %v86, 4294901760
    %466 = vmatpush.msra.mxu0 %v465
    %v467 = vand.u32 %v83, 4294901760
    %468 = vmatpush.msra.mxu0 %v467
    %v469 = vand.u32 %v80, 4294901760
    %470 = vmatpush.msra.mxu0 %v469
    %v471 = vand.u32 %v77, 4294901760
    %472 = vmatpush.msra.mxu0 %v471
    %v473 = vand.u32 %v74, 4294901760
    %474 = vmatpush.msra.mxu0 %v473
    %v475 = vand.u32 %v71, 4294901760
    %476 = vmatpush.msra.mxu0 %v475
    %v477 = vand.u32 %v68, 4294901760
    %478 = vmatpush.msra.mxu0 %v477
    %v479 = vand.u32 %v65, 4294901760
    %480 = vmatpush.msra.mxu0 %v479
    %v481 = vand.u32 %v62, 4294901760
    %482 = vmatpush.msra.mxu0 %v481
    %v483 = vand.u32 %v59, 4294901760
    %484 = vmatpush.msra.mxu0 %v483
    %v485 = vand.u32 %v56, 4294901760
    %486 = vmatpush.msra.mxu0 %v485
    %v487 = vand.u32 %v53, 4294901760
    %488 = vmatpush.msra.mxu0 %v487
    %v489 = vand.u32 %v50, 4294901760
    %490 = vmatpush.msra.mxu0 %v489
    %v491 = vand.u32 %v47, 4294901760
    %492 = vmatpush.msra.mxu0 %v491
    %v493 = vand.u32 %v44, 4294901760
    %494 = vmatpush.msra.mxu0 %v493
    %v495 = vand.u32 %v41, 4294901760
    %v496 = vsub.f32 %v41, %v495
    %v497 = vand.u32 %v496, 4294901760
    %v498 = vsub.f32 %v496, %v497
    %v499 = vand.u32 %v498, 4294901760
    %500 = vmatmul.f32.gmra.mxu0 %v499
    %v501 = vpop.f32.mrf.mxu0
    %v502 = vadd.f32 0.0, %v501
    %v503 = vand.u32 %v42, 4294901760
    %v504 = vsub.f32 %v42, %v503
    %v505 = vand.u32 %v504, 4294901760
    %v506 = vsub.f32 %v504, %v505
    %v507 = vand.u32 %v506, 4294901760
    %508 = vmatmul.f32.gmra.mxu0 %v507
    %v509 = vpop.f32.mrf.mxu0
    %v510 = vadd.f32 0.0, %v509
    %511 = vdwg.mxu0
    %v512 = vand.u32 %v89, 4294901760
    %v513 = vsub.f32 %v89, %v512
    %v514 = vand.u32 %v513, 4294901760
    %v515 = vsub.f32 %v513, %v514
    %v516 = vand.u32 %v515, 4294901760
    %517 = vmatpush.msra.mxu0 %v516
    %v518 = vand.u32 %v86, 4294901760
    %v519 = vsub.f32 %v86, %v518
    %v520 = vand.u32 %v519, 4294901760
    %v521 = vsub.f32 %v519, %v520
    %v522 = vand.u32 %v521, 4294901760
    %523 = vmatpush.msra.mxu0 %v522
    %v524 = vand.u32 %v83, 4294901760
    %v525 = vsub.f32 %v83, %v524
    %v526 = vand.u32 %v525, 4294901760
    %v527 = vsub.f32 %v525, %v526
    %v528 = vand.u32 %v527, 4294901760
    %529 = vmatpush.msra.mxu0 %v528
    %v530 = vand.u32 %v80, 4294901760
    %v531 = vsub.f32 %v80, %v530
    %v532 = vand.u32 %v531, 4294901760
    %v533 = vsub.f32 %v531, %v532
    %v534 = vand.u32 %v533, 4294901760
    %535 = vmatpush.msra.mxu0 %v534
    %v536 = vand.u32 %v77, 4294901760
    %v537 = vsub.f32 %v77, %v536
    %v538 = vand.u32 %v537, 4294901760
    %v539 = vsub.f32 %v537, %v538
    %v540 = vand.u32 %v539, 4294901760
    %541 = vmatpush.msra.mxu0 %v540
    %v542 = vand.u32 %v74, 4294901760
    %v543 = vsub.f32 %v74, %v542
    %v544 = vand.u32 %v543, 4294901760
    %v545 = vsub.f32 %v543, %v544
    %v546 = vand.u32 %v545, 4294901760
    %547 = vmatpush.msra.mxu0 %v546
    %v548 = vand.u32 %v71, 4294901760
    %v549 = vsub.f32 %v71, %v548
    %v550 = vand.u32 %v549, 4294901760
    %v551 = vsub.f32 %v549, %v550
    %v552 = vand.u32 %v551, 4294901760
    %553 = vmatpush.msra.mxu0 %v552
    %v554 = vand.u32 %v68, 4294901760
    %v555 = vsub.f32 %v68, %v554
    %v556 = vand.u32 %v555, 4294901760
    %v557 = vsub.f32 %v555, %v556
    %v558 = vand.u32 %v557, 4294901760
    %559 = vmatpush.msra.mxu0 %v558
    %v560 = vand.u32 %v65, 4294901760
    %v561 = vsub.f32 %v65, %v560
    %v562 = vand.u32 %v561, 4294901760
    %v563 = vsub.f32 %v561, %v562
    %v564 = vand.u32 %v563, 4294901760
    %565 = vmatpush.msra.mxu0 %v564
    %v566 = vand.u32 %v62, 4294901760
    %v567 = vsub.f32 %v62, %v566
    %v568 = vand.u32 %v567, 4294901760
    %v569 = vsub.f32 %v567, %v568
    %v570 = vand.u32 %v569, 4294901760
    %571 = vmatpush.msra.mxu0 %v570
    %v572 = vand.u32 %v59, 4294901760
    %v573 = vsub.f32 %v59, %v572
    %v574 = vand.u32 %v573, 4294901760
    %v575 = vsub.f32 %v573, %v574
    %v576 = vand.u32 %v575, 4294901760
    %577 = vmatpush.msra.mxu0 %v576
    %v578 = vand.u32 %v56, 4294901760
    %v579 = vsub.f32 %v56, %v578
    %v580 = vand.u32 %v579, 4294901760
    %v581 = vsub.f32 %v579, %v580
    %v582 = vand.u32 %v581, 4294901760
    %583 = vmatpush.msra.mxu0 %v582
    %v584 = vand.u32 %v53, 4294901760
    %v585 = vsub.f32 %v53, %v584
    %v586 = vand.u32 %v585, 4294901760
    %v587 = vsub.f32 %v585, %v586
    %v588 = vand.u32 %v587, 4294901760
    %589 = vmatpush.msra.mxu0 %v588
    %v590 = vand.u32 %v50, 4294901760
    %v591 = vsub.f32 %v50, %v590
    %v592 = vand.u32 %v591, 4294901760
    %v593 = vsub.f32 %v591, %v592
    %v594 = vand.u32 %v593, 4294901760
    %595 = vmatpush.msra.mxu0 %v594
    %v596 = vand.u32 %v47, 4294901760
    %v597 = vsub.f32 %v47, %v596
    %v598 = vand.u32 %v597, 4294901760
    %v599 = vsub.f32 %v597, %v598
    %v600 = vand.u32 %v599, 4294901760
    %601 = vmatpush.msra.mxu0 %v600
    %v602 = vand.u32 %v44, 4294901760
    %v603 = vsub.f32 %v44, %v602
    %v604 = vand.u32 %v603, 4294901760
    %v605 = vsub.f32 %v603, %v604
    %v606 = vand.u32 %v605, 4294901760
    %607 = vmatpush.msra.mxu0 %v606
    %v608 = vand.u32 %v41, 4294901760
    %609 = vmatmul.f32.gmra.mxu0 %v608
    %v610 = vpop.f32.mrf.mxu0
    %v611 = vadd.f32 %v502, %v610
    %v612 = vand.u32 %v42, 4294901760
    %613 = vmatmul.f32.gmra.mxu0 %v612
    %v614 = vpop.f32.mrf.mxu0
    %v615 = vadd.f32 %v510, %v614
    %616 = vdwg.mxu0
    %v617 = vand.u32 %v89, 4294901760
    %v618 = vsub.f32 %v89, %v617
    %619 = vmatpush.msra.mxu0 %v618
    %v620 = vand.u32 %v86, 4294901760
    %v621 = vsub.f32 %v86, %v620
    %622 = vmatpush.msra.mxu0 %v621
    %v623 = vand.u32 %v83, 4294901760
    %v624 = vsub.f32 %v83, %v623
    %625 = vmatpush.msra.mxu0 %v624
    %v626 = vand.u32 %v80, 4294901760
    %v627 = vsub.f32 %v80, %v626
    %628 = vmatpush.msra.mxu0 %v627
    %v629 = vand.u32 %v77, 4294901760
    %v630 = vsub.f32 %v77, %v629
    %631 = vmatpush.msra.mxu0 %v630
    %v632 = vand.u32 %v74, 4294901760
    %v633 = vsub.f32 %v74, %v632
    %634 = vmatpush.msra.mxu0 %v633
    %v635 = vand.u32 %v71, 4294901760
    %v636 = vsub.f32 %v71, %v635
    %637 = vmatpush.msra.mxu0 %v636
    %v638 = vand.u32 %v68, 4294901760
    %v639 = vsub.f32 %v68, %v638
    %640 = vmatpush.msra.mxu0 %v639
    %v641 = vand.u32 %v65, 4294901760
    %v642 = vsub.f32 %v65, %v641
    %643 = vmatpush.msra.mxu0 %v642
    %v644 = vand.u32 %v62, 4294901760
    %v645 = vsub.f32 %v62, %v644
    %646 = vmatpush.msra.mxu0 %v645
    %v647 = vand.u32 %v59, 4294901760
    %v648 = vsub.f32 %v59, %v647
    %649 = vmatpush.msra.mxu0 %v648
    %v650 = vand.u32 %v56, 4294901760
    %v651 = vsub.f32 %v56, %v650
    %652 = vmatpush.msra.mxu0 %v651
    %v653 = vand.u32 %v53, 4294901760
    %v654 = vsub.f32 %v53, %v653
    %655 = vmatpush.msra.mxu0 %v654
    %v656 = vand.u32 %v50, 4294901760
    %v657 = vsub.f32 %v50, %v656
    %658 = vmatpush.msra.mxu0 %v657
    %v659 = vand.u32 %v47, 4294901760
    %v660 = vsub.f32 %v47, %v659
    %661 = vmatpush.msra.mxu0 %v660
    %v662 = vand.u32 %v44, 4294901760
    %v663 = vsub.f32 %v44, %v662
    %664 = vmatpush.msra.mxu0 %v663
    %v665 = vand.u32 %v41, 4294901760
    %v666 = vsub.f32 %v41, %v665
    %667 = vmatmul.f32.gmra.mxu0 %v666
    %v668 = vpop.f32.mrf.mxu0
    %v669 = vadd.f32 %v611, %v668
    %v670 = vand.u32 %v42, 4294901760
    %v671 = vsub.f32 %v42, %v670
    %672 = vmatmul.f32.gmra.mxu0 %v671
    %v673 = vpop.f32.mrf.mxu0
    %v674 = vadd.f32 %v615, %v673
    %675 = vdwg.mxu0
    %v676 = vand.u32 %v89, 4294901760
    %677 = vmatpush.msra.mxu0 %v676
    %v678 = vand.u32 %v86, 4294901760
    %679 = vmatpush.msra.mxu0 %v678
    %v680 = vand.u32 %v83, 4294901760
    %681 = vmatpush.msra.mxu0 %v680
    %v682 = vand.u32 %v80, 4294901760
    %683 = vmatpush.msra.mxu0 %v682
    %v684 = vand.u32 %v77, 4294901760
    %685 = vmatpush.msra.mxu0 %v684
    %v686 = vand.u32 %v74, 4294901760
    %687 = vmatpush.msra.mxu0 %v686
    %v688 = vand.u32 %v71, 4294901760
    %689 = vmatpush.msra.mxu0 %v688
    %v690 = vand.u32 %v68, 4294901760
    %691 = vmatpush.msra.mxu0 %v690
    %v692 = vand.u32 %v65, 4294901760
    %693 = vmatpush.msra.mxu0 %v692
    %v694 = vand.u32 %v62, 4294901760
    %695 = vmatpush.msra.mxu0 %v694
    %v696 = vand.u32 %v59, 4294901760
    %697 = vmatpush.msra.mxu0 %v696
    %v698 = vand.u32 %v56, 4294901760
    %699 = vmatpush.msra.mxu0 %v698
    %v700 = vand.u32 %v53, 4294901760
    %701 = vmatpush.msra.mxu0 %v700
    %v702 = vand.u32 %v50, 4294901760
    %703 = vmatpush.msra.mxu0 %v702
    %v704 = vand.u32 %v47, 4294901760
    %705 = vmatpush.msra.mxu0 %v704
    %v706 = vand.u32 %v44, 4294901760
    %707 = vmatpush.msra.mxu0 %v706
    %v708 = vand.u32 %v41, 4294901760
    %v709 = vsub.f32 %v41, %v708
    %v710 = vand.u32 %v709, 4294901760
    %711 = vmatmul.f32.gmra.mxu0 %v710
    %v712 = vpop.f32.mrf.mxu0
    %v713 = vadd.f32 %v669, %v712
    %v714 = vand.u32 %v42, 4294901760
    %v715 = vsub.f32 %v42, %v714
    %v716 = vand.u32 %v715, 4294901760
    %717 = vmatmul.f32.gmra.mxu0 %v716
    %v718 = vpop.f32.mrf.mxu0
    %v719 = vadd.f32 %v674, %v718
    %720 = vdwg.mxu0
    %v721 = vand.u32 %v89, 4294901760
    %v722 = vsub.f32 %v89, %v721
    %v723 = vand.u32 %v722, 4294901760
    %724 = vmatpush.msra.mxu0 %v723
    %v725 = vand.u32 %v86, 4294901760
    %v726 = vsub.f32 %v86, %v725
    %v727 = vand.u32 %v726, 4294901760
    %728 = vmatpush.msra.mxu0 %v727
    %v729 = vand.u32 %v83, 4294901760
    %v730 = vsub.f32 %v83, %v729
    %v731 = vand.u32 %v730, 4294901760
    %732 = vmatpush.msra.mxu0 %v731
    %v733 = vand.u32 %v80, 4294901760
    %v734 = vsub.f32 %v80, %v733
    %v735 = vand.u32 %v734, 4294901760
    %736 = vmatpush.msra.mxu0 %v735
    %v737 = vand.u32 %v77, 4294901760
    %v738 = vsub.f32 %v77, %v737
    %v739 = vand.u32 %v738, 4294901760
    %740 = vmatpush.msra.mxu0 %v739
    %v741 = vand.u32 %v74, 4294901760
    %v742 = vsub.f32 %v74, %v741
    %v743 = vand.u32 %v742, 4294901760
    %744 = vmatpush.msra.mxu0 %v743
    %v745 = vand.u32 %v71, 4294901760
    %v746 = vsub.f32 %v71, %v745
    %v747 = vand.u32 %v746, 4294901760
    %748 = vmatpush.msra.mxu0 %v747
    %v749 = vand.u32 %v68, 4294901760
    %v750 = vsub.f32 %v68, %v749
    %v751 = vand.u32 %v750, 4294901760
    %752 = vmatpush.msra.mxu0 %v751
    %v753 = vand.u32 %v65, 4294901760
    %v754 = vsub.f32 %v65, %v753
    %v755 = vand.u32 %v754, 4294901760
    %756 = vmatpush.msra.mxu0 %v755
    %v757 = vand.u32 %v62, 4294901760
    %v758 = vsub.f32 %v62, %v757
    %v759 = vand.u32 %v758, 4294901760
    %760 = vmatpush.msra.mxu0 %v759
    %v761 = vand.u32 %v59, 4294901760
    %v762 = vsub.f32 %v59, %v761
    %v763 = vand.u32 %v762, 4294901760
    %764 = vmatpush.msra.mxu0 %v763
    %v765 = vand.u32 %v56, 4294901760
    %v766 = vsub.f32 %v56, %v765
    %v767 = vand.u32 %v766, 4294901760
    %768 = vmatpush.msra.mxu0 %v767
    %v769 = vand.u32 %v53, 4294901760
    %v770 = vsub.f32 %v53, %v769
    %v771 = vand.u32 %v770, 4294901760
    %772 = vmatpush.msra.mxu0 %v771
    %v773 = vand.u32 %v50, 4294901760
    %v774 = vsub.f32 %v50, %v773
    %v775 = vand.u32 %v774, 4294901760
    %776 = vmatpush.msra.mxu0 %v775
    %v777 = vand.u32 %v47, 4294901760
    %v778 = vsub.f32 %v47, %v777
    %v779 = vand.u32 %v778, 4294901760
    %780 = vmatpush.msra.mxu0 %v779
    %v781 = vand.u32 %v44, 4294901760
    %v782 = vsub.f32 %v44, %v781
    %v783 = vand.u32 %v782, 4294901760
    %784 = vmatpush.msra.mxu0 %v783
    %v785 = vand.u32 %v41, 4294901760
    %786 = vmatmul.f32.gmra.mxu0 %v785
    %v787 = vpop.f32.mrf.mxu0
    %v788 = vadd.f32 %v713, %v787
    %v789 = vand.u32 %v42, 4294901760
    %790 = vmatmul.f32.gmra.mxu0 %v789
    %v791 = vpop.f32.mrf.mxu0
    %v792 = vadd.f32 %v719, %v791
    %793 = vdwg.mxu0
    %v794 = vand.u32 %v89, 4294901760
    %795 = vmatpush.msra.mxu0 %v794
    %v796 = vand.u32 %v86, 4294901760
    %797 = vmatpush.msra.mxu0 %v796
    %v798 = vand.u32 %v83, 4294901760
    %799 = vmatpush.msra.mxu0 %v798
    %v800 = vand.u32 %v80, 4294901760
    %801 = vmatpush.msra.mxu0 %v800
    %v802 = vand.u32 %v77, 4294901760
    %803 = vmatpush.msra.mxu0 %v802
    %v804 = vand.u32 %v74, 4294901760
    %805 = vmatpush.msra.mxu0 %v804
    %v806 = vand.u32 %v71, 4294901760
    %807 = vmatpush.msra.mxu0 %v806
    %v808 = vand.u32 %v68, 4294901760
    %809 = vmatpush.msra.mxu0 %v808
    %v810 = vand.u32 %v65, 4294901760
    %811 = vmatpush.msra.mxu0 %v810
    %v812 = vand.u32 %v62, 4294901760
    %813 = vmatpush.msra.mxu0 %v812
    %v814 = vand.u32 %v59, 4294901760
    %815 = vmatpush.msra.mxu0 %v814
    %v816 = vand.u32 %v56, 4294901760
    %817 = vmatpush.msra.mxu0 %v816
    %v818 = vand.u32 %v53, 4294901760
    %819 = vmatpush.msra.mxu0 %v818
    %v820 = vand.u32 %v50, 4294901760
    %821 = vmatpush.msra.mxu0 %v820
    %v822 = vand.u32 %v47, 4294901760
    %823 = vmatpush.msra.mxu0 %v822
    %v824 = vand.u32 %v44, 4294901760
    %825 = vmatpush.msra.mxu0 %v824
    %v826 = vand.u32 %v41, 4294901760
    %827 = vmatmul.f32.gmra.mxu0 %v826
    %v828 = vpop.f32.mrf.mxu0
    %v829 = vadd.f32 %v788, %v828
    %v830 = vand.u32 %v42, 4294901760
    %831 = vmatmul.f32.gmra.mxu0 %v830
    %v832 = vpop.f32.mrf.mxu0
    %v833 = vadd.f32 %v792, %v832
    %834 = vdwg.mxu0
    %v835 = vand.u32 %v90, 4294901760
    %836 = vmatpush.msra.mxu0 %v835
    %v837 = vand.u32 %v87, 4294901760
    %838 = vmatpush.msra.mxu0 %v837
    %v839 = vand.u32 %v84, 4294901760
    %840 = vmatpush.msra.mxu0 %v839
    %v841 = vand.u32 %v81, 4294901760
    %842 = vmatpush.msra.mxu0 %v841
    %v843 = vand.u32 %v78, 4294901760
    %844 = vmatpush.msra.mxu0 %v843
    %v845 = vand.u32 %v75, 4294901760
    %846 = vmatpush.msra.mxu0 %v845
    %v847 = vand.u32 %v72, 4294901760
    %848 = vmatpush.msra.mxu0 %v847
    %v849 = vand.u32 %v69, 4294901760
    %850 = vmatpush.msra.mxu0 %v849
    %v851 = vand.u32 %v66, 4294901760
    %852 = vmatpush.msra.mxu0 %v851
    %v853 = vand.u32 %v63, 4294901760
    %854 = vmatpush.msra.mxu0 %v853
    %v855 = vand.u32 %v60, 4294901760
    %856 = vmatpush.msra.mxu0 %v855
    %v857 = vand.u32 %v57, 4294901760
    %858 = vmatpush.msra.mxu0 %v857
    %v859 = vand.u32 %v54, 4294901760
    %860 = vmatpush.msra.mxu0 %v859
    %v861 = vand.u32 %v51, 4294901760
    %862 = vmatpush.msra.mxu0 %v861
    %v863 = vand.u32 %v48, 4294901760
    %864 = vmatpush.msra.mxu0 %v863
    %v865 = vand.u32 %v45, 4294901760
    %866 = vmatpush.msra.mxu0 %v865
    %v867 = vand.u32 %v41, 4294901760
    %v868 = vsub.f32 %v41, %v867
    %v869 = vand.u32 %v868, 4294901760
    %v870 = vsub.f32 %v868, %v869
    %v871 = vand.u32 %v870, 4294901760
    %872 = vmatmul.f32.gmra.mxu0 %v871
    %v873 = vpop.f32.mrf.mxu0
    %v874 = vadd.f32 0.0, %v873
    %v875 = vand.u32 %v42, 4294901760
    %v876 = vsub.f32 %v42, %v875
    %v877 = vand.u32 %v876, 4294901760
    %v878 = vsub.f32 %v876, %v877
    %v879 = vand.u32 %v878, 4294901760
    %880 = vmatmul.f32.gmra.mxu0 %v879
    %v881 = vpop.f32.mrf.mxu0
    %v882 = vadd.f32 0.0, %v881
    %883 = vdwg.mxu0
    %v884 = vand.u32 %v90, 4294901760
    %v885 = vsub.f32 %v90, %v884
    %v886 = vand.u32 %v885, 4294901760
    %v887 = vsub.f32 %v885, %v886
    %v888 = vand.u32 %v887, 4294901760
    %889 = vmatpush.msra.mxu0 %v888
    %v890 = vand.u32 %v87, 4294901760
    %v891 = vsub.f32 %v87, %v890
    %v892 = vand.u32 %v891, 4294901760
    %v893 = vsub.f32 %v891, %v892
    %v894 = vand.u32 %v893, 4294901760
    %895 = vmatpush.msra.mxu0 %v894
    %v896 = vand.u32 %v84, 4294901760
    %v897 = vsub.f32 %v84, %v896
    %v898 = vand.u32 %v897, 4294901760
    %v899 = vsub.f32 %v897, %v898
    %v900 = vand.u32 %v899, 4294901760
    %901 = vmatpush.msra.mxu0 %v900
    %v902 = vand.u32 %v81, 4294901760
    %v903 = vsub.f32 %v81, %v902
    %v904 = vand.u32 %v903, 4294901760
    %v905 = vsub.f32 %v903, %v904
    %v906 = vand.u32 %v905, 4294901760
    %907 = vmatpush.msra.mxu0 %v906
    %v908 = vand.u32 %v78, 4294901760
    %v909 = vsub.f32 %v78, %v908
    %v910 = vand.u32 %v909, 4294901760
    %v911 = vsub.f32 %v909, %v910
    %v912 = vand.u32 %v911, 4294901760
    %913 = vmatpush.msra.mxu0 %v912
    %v914 = vand.u32 %v75, 4294901760
    %v915 = vsub.f32 %v75, %v914
    %v916 = vand.u32 %v915, 4294901760
    %v917 = vsub.f32 %v915, %v916
    %v918 = vand.u32 %v917, 4294901760
    %919 = vmatpush.msra.mxu0 %v918
    %v920 = vand.u32 %v72, 4294901760
    %v921 = vsub.f32 %v72, %v920
    %v922 = vand.u32 %v921, 4294901760
    %v923 = vsub.f32 %v921, %v922
    %v924 = vand.u32 %v923, 4294901760
    %925 = vmatpush.msra.mxu0 %v924
    %v926 = vand.u32 %v69, 4294901760
    %v927 = vsub.f32 %v69, %v926
    %v928 = vand.u32 %v927, 4294901760
    %v929 = vsub.f32 %v927, %v928
    %v930 = vand.u32 %v929, 4294901760
    %931 = vmatpush.msra.mxu0 %v930
    %v932 = vand.u32 %v66, 4294901760
    %v933 = vsub.f32 %v66, %v932
    %v934 = vand.u32 %v933, 4294901760
    %v935 = vsub.f32 %v933, %v934
    %v936 = vand.u32 %v935, 4294901760
    %937 = vmatpush.msra.mxu0 %v936
    %v938 = vand.u32 %v63, 4294901760
    %v939 = vsub.f32 %v63, %v938
    %v940 = vand.u32 %v939, 4294901760
    %v941 = vsub.f32 %v939, %v940
    %v942 = vand.u32 %v941, 4294901760
    %943 = vmatpush.msra.mxu0 %v942
    %v944 = vand.u32 %v60, 4294901760
    %v945 = vsub.f32 %v60, %v944
    %v946 = vand.u32 %v945, 4294901760
    %v947 = vsub.f32 %v945, %v946
    %v948 = vand.u32 %v947, 4294901760
    %949 = vmatpush.msra.mxu0 %v948
    %v950 = vand.u32 %v57, 4294901760
    %v951 = vsub.f32 %v57, %v950
    %v952 = vand.u32 %v951, 4294901760
    %v953 = vsub.f32 %v951, %v952
    %v954 = vand.u32 %v953, 4294901760
    %955 = vmatpush.msra.mxu0 %v954
    %v956 = vand.u32 %v54, 4294901760
    %v957 = vsub.f32 %v54, %v956
    %v958 = vand.u32 %v957, 4294901760
    %v959 = vsub.f32 %v957, %v958
    %v960 = vand.u32 %v959, 4294901760
    %961 = vmatpush.msra.mxu0 %v960
    %v962 = vand.u32 %v51, 4294901760
    %v963 = vsub.f32 %v51, %v962
    %v964 = vand.u32 %v963, 4294901760
    %v965 = vsub.f32 %v963, %v964
    %v966 = vand.u32 %v965, 4294901760
    %967 = vmatpush.msra.mxu0 %v966
    %v968 = vand.u32 %v48, 4294901760
    %v969 = vsub.f32 %v48, %v968
    %v970 = vand.u32 %v969, 4294901760
    %v971 = vsub.f32 %v969, %v970
    %v972 = vand.u32 %v971, 4294901760
    %973 = vmatpush.msra.mxu0 %v972
    %v974 = vand.u32 %v45, 4294901760
    %v975 = vsub.f32 %v45, %v974
    %v976 = vand.u32 %v975, 4294901760
    %v977 = vsub.f32 %v975, %v976
    %v978 = vand.u32 %v977, 4294901760
    %979 = vmatpush.msra.mxu0 %v978
    %v980 = vand.u32 %v41, 4294901760
    %981 = vmatmul.f32.gmra.mxu0 %v980
    %v982 = vpop.f32.mrf.mxu0
    %v983 = vadd.f32 %v874, %v982
    %v984 = vand.u32 %v42, 4294901760
    %985 = vmatmul.f32.gmra.mxu0 %v984
    %v986 = vpop.f32.mrf.mxu0
    %v987 = vadd.f32 %v882, %v986
    %988 = vdwg.mxu0
    %v989 = vand.u32 %v90, 4294901760
    %v990 = vsub.f32 %v90, %v989
    %991 = vmatpush.msra.mxu0 %v990
    %v992 = vand.u32 %v87, 4294901760
    %v993 = vsub.f32 %v87, %v992
    %994 = vmatpush.msra.mxu0 %v993
    %v995 = vand.u32 %v84, 4294901760
    %v996 = vsub.f32 %v84, %v995
    %997 = vmatpush.msra.mxu0 %v996
    %v998 = vand.u32 %v81, 4294901760
    %v999 = vsub.f32 %v81, %v998
    %1000 = vmatpush.msra.mxu0 %v999
    %v1001 = vand.u32 %v78, 4294901760
    %v1002 = vsub.f32 %v78, %v1001
    %1003 = vmatpush.msra.mxu0 %v1002
    %v1004 = vand.u32 %v75, 4294901760
    %v1005 = vsub.f32 %v75, %v1004
    %1006 = vmatpush.msra.mxu0 %v1005
    %v1007 = vand.u32 %v72, 4294901760
    %v1008 = vsub.f32 %v72, %v1007
    %1009 = vmatpush.msra.mxu0 %v1008
    %v1010 = vand.u32 %v69, 4294901760
    %v1011 = vsub.f32 %v69, %v1010
    %1012 = vmatpush.msra.mxu0 %v1011
    %v1013 = vand.u32 %v66, 4294901760
    %v1014 = vsub.f32 %v66, %v1013
    %1015 = vmatpush.msra.mxu0 %v1014
    %v1016 = vand.u32 %v63, 4294901760
    %v1017 = vsub.f32 %v63, %v1016
    %1018 = vmatpush.msra.mxu0 %v1017
    %v1019 = vand.u32 %v60, 4294901760
    %v1020 = vsub.f32 %v60, %v1019
    %1021 = vmatpush.msra.mxu0 %v1020
    %v1022 = vand.u32 %v57, 4294901760
    %v1023 = vsub.f32 %v57, %v1022
    %1024 = vmatpush.msra.mxu0 %v1023
    %v1025 = vand.u32 %v54, 4294901760
    %v1026 = vsub.f32 %v54, %v1025
    %1027 = vmatpush.msra.mxu0 %v1026
    %v1028 = vand.u32 %v51, 4294901760
    %v1029 = vsub.f32 %v51, %v1028
    %1030 = vmatpush.msra.mxu0 %v1029
    %v1031 = vand.u32 %v48, 4294901760
    %v1032 = vsub.f32 %v48, %v1031
    %1033 = vmatpush.msra.mxu0 %v1032
    %v1034 = vand.u32 %v45, 4294901760
    %v1035 = vsub.f32 %v45, %v1034
    %1036 = vmatpush.msra.mxu0 %v1035
    %v1037 = vand.u32 %v41, 4294901760
    %v1038 = vsub.f32 %v41, %v1037
    %1039 = vmatmul.f32.gmra.mxu0 %v1038
    %v1040 = vpop.f32.mrf.mxu0
    %v1041 = vadd.f32 %v983, %v1040
    %v1042 = vand.u32 %v42, 4294901760
    %v1043 = vsub.f32 %v42, %v1042
    %1044 = vmatmul.f32.gmra.mxu0 %v1043
    %v1045 = vpop.f32.mrf.mxu0
    %v1046 = vadd.f32 %v987, %v1045
    %1047 = vdwg.mxu0
    %v1048 = vand.u32 %v90, 4294901760
    %1049 = vmatpush.msra.mxu0 %v1048
    %v1050 = vand.u32 %v87, 4294901760
    %1051 = vmatpush.msra.mxu0 %v1050
    %v1052 = vand.u32 %v84, 4294901760
    %1053 = vmatpush.msra.mxu0 %v1052
    %v1054 = vand.u32 %v81, 4294901760
    %1055 = vmatpush.msra.mxu0 %v1054
    %v1056 = vand.u32 %v78, 4294901760
    %1057 = vmatpush.msra.mxu0 %v1056
    %v1058 = vand.u32 %v75, 4294901760
    %1059 = vmatpush.msra.mxu0 %v1058
    %v1060 = vand.u32 %v72, 4294901760
    %1061 = vmatpush.msra.mxu0 %v1060
    %v1062 = vand.u32 %v69, 4294901760
    %1063 = vmatpush.msra.mxu0 %v1062
    %v1064 = vand.u32 %v66, 4294901760
    %1065 = vmatpush.msra.mxu0 %v1064
    %v1066 = vand.u32 %v63, 4294901760
    %1067 = vmatpush.msra.mxu0 %v1066
    %v1068 = vand.u32 %v60, 4294901760
    %1069 = vmatpush.msra.mxu0 %v1068
    %v1070 = vand.u32 %v57, 4294901760
    %1071 = vmatpush.msra.mxu0 %v1070
    %v1072 = vand.u32 %v54, 4294901760
    %1073 = vmatpush.msra.mxu0 %v1072
    %v1074 = vand.u32 %v51, 4294901760
    %1075 = vmatpush.msra.mxu0 %v1074
    %v1076 = vand.u32 %v48, 4294901760
    %1077 = vmatpush.msra.mxu0 %v1076
    %v1078 = vand.u32 %v45, 4294901760
    %1079 = vmatpush.msra.mxu0 %v1078
    %v1080 = vand.u32 %v41, 4294901760
    %v1081 = vsub.f32 %v41, %v1080
    %v1082 = vand.u32 %v1081, 4294901760
    %1083 = vmatmul.f32.gmra.mxu0 %v1082
    %v1084 = vpop.f32.mrf.mxu0
    %v1085 = vadd.f32 %v1041, %v1084
    %v1086 = vand.u32 %v42, 4294901760
    %v1087 = vsub.f32 %v42, %v1086
    %v1088 = vand.u32 %v1087, 4294901760
    %1089 = vmatmul.f32.gmra.mxu0 %v1088
    %v1090 = vpop.f32.mrf.mxu0
    %v1091 = vadd.f32 %v1046, %v1090
    %1092 = vdwg.mxu0
    %v1093 = vand.u32 %v90, 4294901760
    %v1094 = vsub.f32 %v90, %v1093
    %v1095 = vand.u32 %v1094, 4294901760
    %1096 = vmatpush.msra.mxu0 %v1095
    %v1097 = vand.u32 %v87, 4294901760
    %v1098 = vsub.f32 %v87, %v1097
    %v1099 = vand.u32 %v1098, 4294901760
    %1100 = vmatpush.msra.mxu0 %v1099
    %v1101 = vand.u32 %v84, 4294901760
    %v1102 = vsub.f32 %v84, %v1101
    %v1103 = vand.u32 %v1102, 4294901760
    %1104 = vmatpush.msra.mxu0 %v1103
    %v1105 = vand.u32 %v81, 4294901760
    %v1106 = vsub.f32 %v81, %v1105
    %v1107 = vand.u32 %v1106, 4294901760
    %1108 = vmatpush.msra.mxu0 %v1107
    %v1109 = vand.u32 %v78, 4294901760
    %v1110 = vsub.f32 %v78, %v1109
    %v1111 = vand.u32 %v1110, 4294901760
    %1112 = vmatpush.msra.mxu0 %v1111
    %v1113 = vand.u32 %v75, 4294901760
    %v1114 = vsub.f32 %v75, %v1113
    %v1115 = vand.u32 %v1114, 4294901760
    %1116 = vmatpush.msra.mxu0 %v1115
    %v1117 = vand.u32 %v72, 4294901760
    %v1118 = vsub.f32 %v72, %v1117
    %v1119 = vand.u32 %v1118, 4294901760
    %1120 = vmatpush.msra.mxu0 %v1119
    %v1121 = vand.u32 %v69, 4294901760
    %v1122 = vsub.f32 %v69, %v1121
    %v1123 = vand.u32 %v1122, 4294901760
    %1124 = vmatpush.msra.mxu0 %v1123
    %v1125 = vand.u32 %v66, 4294901760
    %v1126 = vsub.f32 %v66, %v1125
    %v1127 = vand.u32 %v1126, 4294901760
    %1128 = vmatpush.msra.mxu0 %v1127
    %v1129 = vand.u32 %v63, 4294901760
    %v1130 = vsub.f32 %v63, %v1129
    %v1131 = vand.u32 %v1130, 4294901760
    %1132 = vmatpush.msra.mxu0 %v1131
    %v1133 = vand.u32 %v60, 4294901760
    %v1134 = vsub.f32 %v60, %v1133
    %v1135 = vand.u32 %v1134, 4294901760
    %1136 = vmatpush.msra.mxu0 %v1135
    %v1137 = vand.u32 %v57, 4294901760
    %v1138 = vsub.f32 %v57, %v1137
    %v1139 = vand.u32 %v1138, 4294901760
    %1140 = vmatpush.msra.mxu0 %v1139
    %v1141 = vand.u32 %v54, 4294901760
    %v1142 = vsub.f32 %v54, %v1141
    %v1143 = vand.u32 %v1142, 4294901760
    %1144 = vmatpush.msra.mxu0 %v1143
    %v1145 = vand.u32 %v51, 4294901760
    %v1146 = vsub.f32 %v51, %v1145
    %v1147 = vand.u32 %v1146, 4294901760
    %1148 = vmatpush.msra.mxu0 %v1147
    %v1149 = vand.u32 %v48, 4294901760
    %v1150 = vsub.f32 %v48, %v1149
    %v1151 = vand.u32 %v1150, 4294901760
    %1152 = vmatpush.msra.mxu0 %v1151
    %v1153 = vand.u32 %v45, 4294901760
    %v1154 = vsub.f32 %v45, %v1153
    %v1155 = vand.u32 %v1154, 4294901760
    %1156 = vmatpush.msra.mxu0 %v1155
    %v1157 = vand.u32 %v41, 4294901760
    %1158 = vmatmul.f32.gmra.mxu0 %v1157
    %v1159 = vpop.f32.mrf.mxu0
    %v1160 = vadd.f32 %v1085, %v1159
    %v1161 = vand.u32 %v42, 4294901760
    %1162 = vmatmul.f32.gmra.mxu0 %v1161
    %v1163 = vpop.f32.mrf.mxu0
    %v1164 = vadd.f32 %v1091, %v1163
    %1165 = vdwg.mxu0
    %v1166 = vand.u32 %v90, 4294901760
    %1167 = vmatpush.msra.mxu0 %v1166
    %v1168 = vand.u32 %v87, 4294901760
    %1169 = vmatpush.msra.mxu0 %v1168
    %v1170 = vand.u32 %v84, 4294901760
    %1171 = vmatpush.msra.mxu0 %v1170
    %v1172 = vand.u32 %v81, 4294901760
    %1173 = vmatpush.msra.mxu0 %v1172
    %v1174 = vand.u32 %v78, 4294901760
    %1175 = vmatpush.msra.mxu0 %v1174
    %v1176 = vand.u32 %v75, 4294901760
    %1177 = vmatpush.msra.mxu0 %v1176
    %v1178 = vand.u32 %v72, 4294901760
    %1179 = vmatpush.msra.mxu0 %v1178
    %v1180 = vand.u32 %v69, 4294901760
    %1181 = vmatpush.msra.mxu0 %v1180
    %v1182 = vand.u32 %v66, 4294901760
    %1183 = vmatpush.msra.mxu0 %v1182
    %v1184 = vand.u32 %v63, 4294901760
    %1185 = vmatpush.msra.mxu0 %v1184
    %v1186 = vand.u32 %v60, 4294901760
    %1187 = vmatpush.msra.mxu0 %v1186
    %v1188 = vand.u32 %v57, 4294901760
    %1189 = vmatpush.msra.mxu0 %v1188
    %v1190 = vand.u32 %v54, 4294901760
    %1191 = vmatpush.msra.mxu0 %v1190
    %v1192 = vand.u32 %v51, 4294901760
    %1193 = vmatpush.msra.mxu0 %v1192
    %v1194 = vand.u32 %v48, 4294901760
    %1195 = vmatpush.msra.mxu0 %v1194
    %v1196 = vand.u32 %v45, 4294901760
    %1197 = vmatpush.msra.mxu0 %v1196
    %v1198 = vand.u32 %v41, 4294901760
    %1199 = vmatmul.f32.gmra.mxu0 %v1198
    %v1200 = vpop.f32.mrf.mxu0
    %v1201 = vadd.f32 %v1160, %v1200
    %v1202 = vand.u32 %v42, 4294901760
    %1203 = vmatmul.f32.gmra.mxu0 %v1202
    %v1204 = vpop.f32.mrf.mxu0
    %v1205 = vadd.f32 %v1164, %v1204
    %1206 = vdwg.mxu0
    %1207 = vst [vmem:[%s2] sm:$0xff] %v457
    %1208 = vst [vmem:[%s2 + $0x8] sm:$0xff] %v829
    %1209 = vst [vmem:[%s2 + $0x10] sm:$0xff] %v1201
    %1210 = vst [vmem:[%s2 + $0x18] sm:$0xff] %v461
    %1211 = vst [vmem:[%s2 + $0x20] sm:$0xff] %v833
    %1212 = vst [vmem:[%s2 + $0x28] sm:$0xff] %v1205
    // Predicated region
    $region14: #{word_embedding2_forward.1} parent=1 // pred_check
      _
    $region15: #{word_embedding2_forward.1} parent=1 // pred_check_branch
      %1214 = sbr.rel (0) target = $region17
    $region16: #{word_embedding2_forward.1} parent=1 // pred_region
      _
    $region17: #{word_embedding2_forward.1} parent=1 // pred_fallthru
      _
    // Predicated region
    $region18: #{word_embedding2_forward.1} parent=1 // pred_check
      _
    $region19: #{word_embedding2_forward.1} parent=1 // pred_check_branch
      %1216 = sbr.rel (0) target = $region21
    $region20: #{word_embedding2_forward.1} parent=1 // pred_region
      _
    $region21: #{word_embedding2_forward.1} parent=1 // pred_fallthru
      _
    %1217 = vsyncpa [#allocation3], 1

</llo_original>
